<compile_context>
chip_gen: v7x
topology: tpu7x:2x2x1
jax: 0.10.0
libtpu: 0.0.40
codegen_flags: <defaults>
</compile_context>

<pallas_src>
import functools

import numpy as np
import jax
import jax.numpy as jnp
from jax import lax
from jax.experimental import pallas as pl
from jax.experimental.pallas import tpu as pltpu


def make_kernel(k, upsample_factor=1):
    """Trace-time mirror of the PyTorch make_kernel() (+ Blur's upsample scaling)."""
    k = np.asarray(k, dtype=np.float32)
    if k.ndim == 1:
        k = k[None, :] * k[:, None]
    k = k / k.sum()
    if upsample_factor > 1:
        k = k * (upsample_factor ** 2)
    return k


def _tree_sum(terms):
    # Pairwise accumulation tree: keeps several independent partial sums in
    # flight so the 4 VALU slots/cycle stay busy (vs. a serial dependent chain).
    terms = list(terms)
    while len(terms) > 1:
        nxt = [terms[i] + terms[i + 1] for i in range(0, len(terms) - 1, 2)]
        if len(terms) % 2:
            nxt.append(terms[-1])
        terms = nxt
    return terms[0]


def _blur_kernel(x_ref, o_ref, pad_ref, *, p0, hout, wout, cx_taps, cy_taps,
                 taps_2d):
    """One row-tile of image planes.

    x_ref:   (rt, H, W)        unpadded input planes
    o_ref:   (rt, Hout, Wout)  exact output (no crop needed afterwards)
    pad_ref: (rt, Hp, Wp) f32  VMEM scratch used for in-kernel zero padding
    """
    H, W = x_ref.shape[1], x_ref.shape[2]
    # Zero every step: the scratch is per-core and with a "parallel" grid axis
    # the program_id==0 iteration may not run on every TensorCore.
    pad_ref[...] = jnp.zeros_like(pad_ref)
    pad_ref[:, p0:p0 + H, p0:p0 + W] = x_ref[...].astype(jnp.float32)
    xv = pad_ref[...]

    if taps_2d is None:
        # Separable blur: horizontal (lane axis) pass, then vertical (sublane axis).
        h = _tree_sum([c * xv[:, :, kx:kx + wout] for kx, c in cx_taps])
        acc = _tree_sum([c * h[:, ky:ky + hout, :] for ky, c in cy_taps])
    else:
        acc = _tree_sum([c * xv[:, ky:ky + hout, kx:kx + wout]
                         for ky, kx, c in taps_2d])
    o_ref[...] = acc.astype(o_ref.dtype)


def _separate(kernel_2d):
    """Return flipped-tap 1-D factors (cy, cx) with outer(cy,cx)==flip(k2d), or None."""
    k = np.asarray(kernel_2d, dtype=np.float64)
    u, s, vt = np.linalg.svd(k)
    if s[0] == 0.0:
        return None
    if len(s) > 1 and s[1] > 1e-6 * s[0]:
        return None
    cy = u[:, 0] * s[0]
    cx = vt[0, :]
    if np.max(np.abs(np.outer(cy, cx) - k)) > 1e-6 * max(np.max(np.abs(k)), 1e-30):
        return None
    # upfirdn2d does true convolution -> flip the taps.
    return cy[::-1], cx[::-1]


def blur(x, kernel_2d, pad):
    """x: (B, C, H, W) NCHW, kernel_2d: (kh, kw) numpy blur kernel, pad: (pad0, pad1).

    Returns (B, C, H+pad0+pad1-kh+1, W+pad0+pad1-kw+1), matching
    upfirdn2d(x, kernel, up=1, down=1, pad=pad)."""
    B, C, H, W = x.shape
    kh, kw = kernel_2d.shape
    p0, p1 = pad
    assert p0 >= 0 and p1 >= 0  # TODO(synk): negative (cropping) pads not implemented
    Hp, Wp = H + p0 + p1, W + p0 + p1
    Hout, Wout = Hp - kh + 1, Wp - kw + 1
    rows = B * C
    isz = x.dtype.itemsize

    sep = _separate(kernel_2d)
    if sep is not None:
        cy1, cx1 = sep
        cy_taps = tuple((i, float(c)) for i, c in enumerate(cy1) if float(c) != 0.0)
        cx_taps = tuple((i, float(c)) for i, c in enumerate(cx1) if float(c) != 0.0)
        taps_2d = None
        n_mads = Hp * Wout * len(cx_taps) + Hout * Wout * len(cy_taps)
    else:
        kf = np.asarray(kernel_2d, np.float64)[::-1, ::-1]
        taps_2d = tuple((ky, kx, float(kf[ky, kx]))
                        for ky in range(kh) for kx in range(kw)
                        if float(kf[ky, kx]) != 0.0)
        cy_taps = cx_taps = ()
        n_mads = Hout * Wout * len(taps_2d)

    # Generation/dtype-aware VMEM budget and row tiling (only the B*C plane
    # axis is tiled; block last-two dims equal the full (H, W)/(Hout, Wout)).
    per_row = ((2 * H * W + 2 * Hout * Wout) * isz            # double-buffered in/out
               + (Hp * Wp + Hp * Wout + Hout * Wout) * 4)     # pad scratch + f32 temps
    try:
        vmem_phys = int(getattr(pltpu.get_tpu_info(), "vmem_capacity_bytes",
                                64 << 20))
    except Exception:
        vmem_phys = 64 << 20
    vmem_phys = max(vmem_phys, 32 << 20)
    vmem_limit = int(min(vmem_phys * 3 // 4, 96 << 20))
    budget = vmem_limit // 3

    row_tile = 1
    for d in range(1, rows + 1):
        if rows % d:
            continue
        if d * per_row > budget:
            continue
        if rows >= 16 and rows // d < 2:
            continue  # keep >=2 grid steps so both v7x TensorCores get work
        row_tile = d
    # TODO(synk): for planes so large that even row_tile=1 exceeds the VMEM
    # budget, add a second grid axis over output rows with a (kh-1)-row halo.

    kernel = functools.partial(
        _blur_kernel, p0=p0, hout=Hout, wout=Wout,
        cx_taps=cx_taps, cy_taps=cy_taps, taps_2d=taps_2d)

    cost = pl.CostEstimate(
        flops=2 * rows * n_mads,
        transcendentals=0,
        bytes_accessed=rows * (H * W + Hout * Wout) * isz)

    out = pl.pallas_call(
        kernel,
        out_shape=jax.ShapeDtypeStruct((rows, Hout, Wout), x.dtype),
        grid_spec=pltpu.PrefetchScalarGridSpec(
            num_scalar_prefetch=0,
            grid=(rows // row_tile,),
            in_specs=[pl.BlockSpec((row_tile, H, W), lambda i: (i, 0, 0))],
            out_specs=pl.BlockSpec((row_tile, Hout, Wout), lambda i: (i, 0, 0)),
            scratch_shapes=[pltpu.VMEM((row_tile, Hp, Wp), jnp.float32)]),
        compiler_params=pltpu.CompilerParams(
            dimension_semantics=("parallel",),
            vmem_limit_bytes=vmem_limit),
        cost_estimate=cost,
    )(x.reshape(rows, H, W))

    return out.reshape(B, C, Hout, Wout)


def reference(x, kernel_2d, pad):
    """Pure-JAX reference mirroring upfirdn2d_native (up=1, down=1)."""
    B, C, H, W = x.shape
    kh, kw = kernel_2d.shape
    p0, p1 = pad
    Hp, Wp = H + p0 + p1, W + p0 + p1
    xp = jnp.pad(x, ((0, 0), (0, 0), (p0, p1), (p0, p1)))
    w = jnp.flip(jnp.asarray(kernel_2d, jnp.float32), (0, 1))[None, None, :, :]
    out = lax.conv_general_dilated(
        xp.reshape(B * C, 1, Hp, Wp), w, (1, 1), 'VALID',
        dimension_numbers=('NCHW', 'OIHW', 'NCHW'))
    return out.reshape(B, C, Hp - kh + 1, Wp - kw + 1)


if __name__ == "__main__":
    B, C, H, W = 2, 4, 16, 16
    blur_taps = [1, 3, 3, 1]          # standard StyleGAN2 blur kernel
    pad = (2, 1)                      # keeps 16x16 -> 16x16
    k2d = make_kernel(blur_taps)      # Blur(kernel=[1,3,3,1], pad=(2,1))

    x = jax.random.normal(jax.random.PRNGKey(0), (B, C, H, W), jnp.float32)

    out = jax.block_until_ready(blur(x, k2d, pad))
    ref = reference(x, k2d, pad)

    assert out.shape == ref.shape == (B, C, 16, 16), (out.shape, ref.shape)
    assert jnp.allclose(out, ref, atol=1e-5, rtol=1e-5), \
        float(jnp.max(jnp.abs(out - ref)))
    print("KERNEL_OK")
</pallas_src>

<mosaic_0001>
module attributes {stable_mosaic.version = 11 : i64} {
  func.func @_blur_kernel(%arg0: i32, %arg1: memref<8x16x16xf32, #tpu.memory_space<vmem>>, %arg2: memref<8x16x16xf32, #tpu.memory_space<vmem>>, %arg3: memref<8x19x19xf32, #tpu.memory_space<vmem>>) attributes {dimension_semantics = [#tpu.dimension_semantics<parallel>], iteration_bounds = array<i64: 1>, scalar_prefetch = 0 : i64, scratch_operands = 1 : i64, tpu.core_type = #tpu.core_type<tc>, window_params = [{transform_indices = @transform_0, window_bounds = array<i64: 8, 16, 16>}, {transform_indices = @transform_1, window_bounds = array<i64: 8, 16, 16>}]} {
    %cst = arith.constant 0.000000e+00 : f32
    %0 = vector.broadcast %cst : f32 to vector<8x19x19xf32>
    %c0 = arith.constant 0 : index
    %c0_0 = arith.constant 0 : index
    %c0_1 = arith.constant 0 : index
    %1 = vector.load %arg3[%c0, %c0_0, %c0_1] : memref<8x19x19xf32, #tpu.memory_space<vmem>>, vector<8x19x19xf32>
    tpu.vector_store %arg3[%c0, %c0_0, %c0_1], %0 {strides = array<i32>} : memref<8x19x19xf32, #tpu.memory_space<vmem>>, vector<8x19x19xf32>,
    %c0_2 = arith.constant 0 : index
    %c0_3 = arith.constant 0 : index
    %c0_4 = arith.constant 0 : index
    %2 = vector.load %arg1[%c0_2, %c0_3, %c0_4] : memref<8x16x16xf32, #tpu.memory_space<vmem>>, vector<8x16x16xf32>
    %c0_5 = arith.constant 0 : index
    %c2 = arith.constant 2 : index
    %c2_6 = arith.constant 2 : index
    %3 = vector.load %arg3[%c0_5, %c2, %c2_6] : memref<8x19x19xf32, #tpu.memory_space<vmem>>, vector<8x16x16xf32>
    tpu.vector_store %arg3[%c0_5, %c2, %c2_6], %2 {strides = array<i32>} : memref<8x19x19xf32, #tpu.memory_space<vmem>>, vector<8x16x16xf32>,
    %c0_7 = arith.constant 0 : index
    %c0_8 = arith.constant 0 : index
    %c0_9 = arith.constant 0 : index
    %4 = vector.load %arg3[%c0_7, %c0_8, %c0_9] : memref<8x19x19xf32, #tpu.memory_space<vmem>>, vector<8x19x19xf32>
    %5 = vector.extract_strided_slice %4 {offsets = [0, 0, 0], sizes = [8, 19, 16], strides = [1, 1, 1]} : vector<8x19x19xf32> to vector<8x19x16xf32>
    %cst_10 = arith.constant -0.223606795 : f32
    %6 = vector.broadcast %cst_10 : f32 to vector<8x19x16xf32>
    %7 = arith.mulf %6, %5 : vector<8x19x16xf32>
    %8 = vector.extract_strided_slice %4 {offsets = [0, 0, 1], sizes = [8, 19, 16], strides = [1, 1, 1]} : vector<8x19x19xf32> to vector<8x19x16xf32>
    %cst_11 = arith.constant -0.670820415 : f32
    %9 = vector.broadcast %cst_11 : f32 to vector<8x19x16xf32>
    %10 = arith.mulf %9, %8 : vector<8x19x16xf32>
    %11 = vector.extract_strided_slice %4 {offsets = [0, 0, 2], sizes = [8, 19, 16], strides = [1, 1, 1]} : vector<8x19x19xf32> to vector<8x19x16xf32>
    %cst_12 = arith.constant -0.670820415 : f32
    %12 = vector.broadcast %cst_12 : f32 to vector<8x19x16xf32>
    %13 = arith.mulf %12, %11 : vector<8x19x16xf32>
    %14 = vector.extract_strided_slice %4 {offsets = [0, 0, 3], sizes = [8, 19, 16], strides = [1, 1, 1]} : vector<8x19x19xf32> to vector<8x19x16xf32>
    %cst_13 = arith.constant -0.223606795 : f32
    %15 = vector.broadcast %cst_13 : f32 to vector<8x19x16xf32>
    %16 = arith.mulf %15, %14 : vector<8x19x16xf32>
    %17 = arith.addf %7, %10 : vector<8x19x16xf32>
    %18 = arith.addf %13, %16 : vector<8x19x16xf32>
    %19 = arith.addf %17, %18 : vector<8x19x16xf32>
    %20 = vector.extract_strided_slice %19 {offsets = [0, 0, 0], sizes = [8, 16, 16], strides = [1, 1, 1]} : vector<8x19x16xf32> to vector<8x16x16xf32>
    %cst_14 = arith.constant -0.0698771253 : f32
    %21 = vector.broadcast %cst_14 : f32 to vector<8x16x16xf32>
    %22 = arith.mulf %21, %20 : vector<8x16x16xf32>
    %23 = vector.extract_strided_slice %19 {offsets = [0, 1, 0], sizes = [8, 16, 16], strides = [1, 1, 1]} : vector<8x19x16xf32> to vector<8x16x16xf32>
    %cst_15 = arith.constant -0.209631369 : f32
    %24 = vector.broadcast %cst_15 : f32 to vector<8x16x16xf32>
    %25 = arith.mulf %24, %23 : vector<8x16x16xf32>
    %26 = vector.extract_strided_slice %19 {offsets = [0, 2, 0], sizes = [8, 16, 16], strides = [1, 1, 1]} : vector<8x19x16xf32> to vector<8x16x16xf32>
    %cst_16 = arith.constant -0.209631369 : f32
    %27 = vector.broadcast %cst_16 : f32 to vector<8x16x16xf32>
    %28 = arith.mulf %27, %26 : vector<8x16x16xf32>
    %29 = vector.extract_strided_slice %19 {offsets = [0, 3, 0], sizes = [8, 16, 16], strides = [1, 1, 1]} : vector<8x19x16xf32> to vector<8x16x16xf32>
    %cst_17 = arith.constant -0.0698771253 : f32
    %30 = vector.broadcast %cst_17 : f32 to vector<8x16x16xf32>
    %31 = arith.mulf %30, %29 : vector<8x16x16xf32>
    %32 = arith.addf %22, %25 : vector<8x16x16xf32>
    %33 = arith.addf %28, %31 : vector<8x16x16xf32>
    %34 = arith.addf %32, %33 : vector<8x16x16xf32>
    %c0_18 = arith.constant 0 : index
    %c0_19 = arith.constant 0 : index
    %c0_20 = arith.constant 0 : index
    %35 = vector.load %arg2[%c0_18, %c0_19, %c0_20] : memref<8x16x16xf32, #tpu.memory_space<vmem>>, vector<8x16x16xf32>
    tpu.vector_store %arg2[%c0_18, %c0_19, %c0_20], %34 {strides = array<i32>} : memref<8x16x16xf32, #tpu.memory_space<vmem>>, vector<8x16x16xf32>,
    return
  }
  func.func @transform_0(%arg0: i32) -> (i32, i32, i32) {
    %c0_i32 = arith.constant 0 : i32
    %c0_i32_0 = arith.constant 0 : i32
    %c0_i32_1 = arith.constant 0 : i32
    return %arg0, %c0_i32, %c0_i32_0 : i32, i32, i32
  }
  func.func @transform_1(%arg0: i32) -> (i32, i32, i32) {
    %c0_i32 = arith.constant 0 : i32
    %c0_i32_0 = arith.constant 0 : i32
    %c0_i32_1 = arith.constant 0 : i32
    return %arg0, %c0_i32, %c0_i32_0 : i32, i32, i32
  }
}

</mosaic_0001>

<llo_original>
// kernel: tpu_custom_call.1
$region0: #{tpu_custom_call.1}
  #allocation0 [shape = 'u32[]', space=smem, size = 0x4, offset = 0x4, fixed_abs, tag = 'smem constant byte address 0x4 - core index']
  #allocation1 [shape = 'u32[144,128]{1,0:T(1,128)}', space=vmem, size = 0x12000, scoped, tag = 'internal scratch']
  #allocation2 [shape = 'f32[8,19,19]{2,1,0:T(8,128)}', space=vmem, size = 0x18000, scoped, tag = 'scratch operand']
  %s0 = inlined_call_operand.hbm [shape: f32[8,16,16], index: 0, kind: input, shape index: {}]
  %s1 = inlined_call_operand.hbm [shape: f32[8,16,16], index: 1, kind: output, shape index: {}]
  %s2 = sld [smem:[#allocation0]]
  $region18: #{tpu_custom_call.1} parent=0
    _
  %s4 = ssub.s32 1, %s2
  %s5 = scalar_select 0, %s4, %s2
  $region1: #{tpu_custom_call.1} parent=0
    #allocation3 [shape = 'u8[65536]{0}', space=vmem, size = 0x10000, scoped, tag = 'input window, operand 0, single buffered']
    #allocation4 [shape = 's32[1]{0}', space=sflag, size = 0x4, scoped, tag = 'scoped memory for tpu_custom_call.1']
    #allocation5 [shape = 's32[1]{0}', space=sflag, size = 0x4, scoped, tag = 'scoped memory for tpu_custom_call.1']
    #allocation6 [shape = 'u8[65536]{0}', space=vmem, size = 0x10000, scoped, tag = 'output window, operand 0, single buffered']
    %6 = vsyncpa [#allocation4], 0
    %7 = vsyncpa [#allocation5], 0
    // Predicated region
    $region2: #{tpu_custom_call.1} parent=1 // pred_check
      _
    $region3: #{tpu_custom_call.1} parent=1 // pred_check_branch
      %9 = sbr.rel (0) target = $region5
    $region4: #{tpu_custom_call.1} parent=1 // pred_region
      %s11 = ssub.s32 2048, 2048
      %12 = vsyncadd [#allocation4], %s11
      %s13 = sshll.u32 [#allocation3], 4
      %s14 = int_to_ptr.vmem [resolvable:$true] %s13
      %19 = dma.hbm_to_vmem [thread:$0]  %s0, 2048, %s14, [#allocation4], 128, 128, 8
    $region5: #{tpu_custom_call.1} parent=1 // pred_fallthru
      _
    // Predicated region
    $region6: #{tpu_custom_call.1} parent=1 // pred_check
      _
    $region7: #{tpu_custom_call.1} parent=1 // pred_check_branch
      %21 = sbr.rel (0) target = $region9
    $region8: #{tpu_custom_call.1} parent=1 // pred_region
      %22 = dma.done [#allocation4], 2048
    $region9: #{tpu_custom_call.1} parent=1 // pred_fallthru
      _
    %vm23 = vcmask 154624
    %24 = vst.msk [vmem:[#allocation2] sm:$0xff] %vm23, 0.0
    %25 = vst.msk [vmem:[#allocation2 + $0x8] sm:$0xff] %vm23, 0.0
    %vm26 = vcmask 149504
    %27 = vst.msk [vmem:[#allocation2 + $0x10] sm:$0x7] %vm26, 0.0
    %28 = vst.msk [vmem:[#allocation2 + $0x18] sm:$0xff] %vm23, 0.0
    %29 = vst.msk [vmem:[#allocation2 + $0x20] sm:$0xff] %vm23, 0.0
    %30 = vst.msk [vmem:[#allocation2 + $0x28] sm:$0x7] %vm26, 0.0
    %31 = vst.msk [vmem:[#allocation2 + $0x30] sm:$0xff] %vm23, 0.0
    %32 = vst.msk [vmem:[#allocation2 + $0x38] sm:$0xff] %vm23, 0.0
    %33 = vst.msk [vmem:[#allocation2 + $0x40] sm:$0x7] %vm26, 0.0
    %34 = vst.msk [vmem:[#allocation2 + $0x48] sm:$0xff] %vm23, 0.0
    %35 = vst.msk [vmem:[#allocation2 + $0x50] sm:$0xff] %vm23, 0.0
    %36 = vst.msk [vmem:[#allocation2 + $0x58] sm:$0x7] %vm26, 0.0
    %37 = vst.msk [vmem:[#allocation2 + $0x60] sm:$0xff] %vm23, 0.0
    %38 = vst.msk [vmem:[#allocation2 + $0x68] sm:$0xff] %vm23, 0.0
    %39 = vst.msk [vmem:[#allocation2 + $0x70] sm:$0x7] %vm26, 0.0
    %40 = vst.msk [vmem:[#allocation2 + $0x78] sm:$0xff] %vm23, 0.0
    %41 = vst.msk [vmem:[#allocation2 + $0x80] sm:$0xff] %vm23, 0.0
    %42 = vst.msk [vmem:[#allocation2 + $0x88] sm:$0x7] %vm26, 0.0
    %43 = vst.msk [vmem:[#allocation2 + $0x90] sm:$0xff] %vm23, 0.0
    %44 = vst.msk [vmem:[#allocation2 + $0x98] sm:$0xff] %vm23, 0.0
    %45 = vst.msk [vmem:[#allocation2 + $0xa0] sm:$0x7] %vm26, 0.0
    %46 = vst.msk [vmem:[#allocation2 + $0xa8] sm:$0xff] %vm23, 0.0
    %47 = vst.msk [vmem:[#allocation2 + $0xb0] sm:$0xff] %vm23, 0.0
    %48 = vst.msk [vmem:[#allocation2 + $0xb8] sm:$0x7] %vm26, 0.0
    %v49 = vld [vmem:[#allocation3] sm:$0xff]
    %v50 = vld [vmem:[#allocation3 + $0x8] sm:$0xff]
    %v51 = vld [vmem:[#allocation3 + $0x10] sm:$0xff]
    %v52 = vld [vmem:[#allocation3 + $0x18] sm:$0xff]
    %v53 = vld [vmem:[#allocation3 + $0x20] sm:$0xff]
    %v54 = vld [vmem:[#allocation3 + $0x28] sm:$0xff]
    %v55 = vld [vmem:[#allocation3 + $0x30] sm:$0xff]
    %v56 = vld [vmem:[#allocation3 + $0x38] sm:$0xff]
    %v57 = vld [vmem:[#allocation3 + $0x40] sm:$0xff]
    %v58 = vld [vmem:[#allocation3 + $0x48] sm:$0xff]
    %v59 = vld [vmem:[#allocation3 + $0x50] sm:$0xff]
    %v60 = vld [vmem:[#allocation3 + $0x58] sm:$0xff]
    %v61 = vld [vmem:[#allocation3 + $0x60] sm:$0xff]
    %v62 = vld [vmem:[#allocation3 + $0x68] sm:$0xff]
    %v63 = vld [vmem:[#allocation3 + $0x70] sm:$0xff]
    %v64 = vld [vmem:[#allocation3 + $0x78] sm:$0xff]
    %81 = vrot.lane.b32.xlu0 %v49, 2
    %v82 = vpop.permute.xlu0 %81
    %83 = vrot.lane.b32.xlu0 %v50, 2
    %v84 = vpop.permute.xlu0 %83
    %85 = vrot.lane.b32.xlu0 %v51, 2
    %v86 = vpop.permute.xlu0 %85
    %87 = vrot.lane.b32.xlu0 %v52, 2
    %v88 = vpop.permute.xlu0 %87
    %89 = vrot.lane.b32.xlu0 %v53, 2
    %v90 = vpop.permute.xlu0 %89
    %91 = vrot.lane.b32.xlu0 %v54, 2
    %v92 = vpop.permute.xlu0 %91
    %93 = vrot.lane.b32.xlu0 %v55, 2
    %v94 = vpop.permute.xlu0 %93
    %95 = vrot.lane.b32.xlu0 %v56, 2
    %v96 = vpop.permute.xlu0 %95
    %97 = vrot.lane.b32.xlu0 %v57, 2
    %v98 = vpop.permute.xlu0 %97
    %99 = vrot.lane.b32.xlu0 %v58, 2
    %v100 = vpop.permute.xlu0 %99
    %101 = vrot.lane.b32.xlu0 %v59, 2
    %v102 = vpop.permute.xlu0 %101
    %103 = vrot.lane.b32.xlu0 %v60, 2
    %v104 = vpop.permute.xlu0 %103
    %105 = vrot.lane.b32.xlu0 %v61, 2
    %v106 = vpop.permute.xlu0 %105
    %107 = vrot.lane.b32.xlu0 %v62, 2
    %v108 = vpop.permute.xlu0 %107
    %109 = vrot.lane.b32.xlu0 %v63, 2
    %v110 = vpop.permute.xlu0 %109
    %111 = vrot.lane.b32.xlu0 %v64, 2
    %v112 = vpop.permute.xlu0 %111
    %vm129 = vcmask 146448
    %130 = vst.msk [vmem:[#allocation2 + $0x2] sm:$0xff] %vm129, %v82
    %131 = vst.msk [vmem:[#allocation2 + $0xa] sm:$0xff] %vm129, %v84
    %132 = vst.msk [vmem:[#allocation2 + $0x1a] sm:$0xff] %vm129, %v86
    %133 = vst.msk [vmem:[#allocation2 + $0x22] sm:$0xff] %vm129, %v88
    %134 = vst.msk [vmem:[#allocation2 + $0x32] sm:$0xff] %vm129, %v90
    %135 = vst.msk [vmem:[#allocation2 + $0x3a] sm:$0xff] %vm129, %v92
    %136 = vst.msk [vmem:[#allocation2 + $0x4a] sm:$0xff] %vm129, %v94
    %137 = vst.msk [vmem:[#allocation2 + $0x52] sm:$0xff] %vm129, %v96
    %138 = vst.msk [vmem:[#allocation2 + $0x62] sm:$0xff] %vm129, %v98
    %139 = vst.msk [vmem:[#allocation2 + $0x6a] sm:$0xff] %vm129, %v100
    %140 = vst.msk [vmem:[#allocation2 + $0x7a] sm:$0xff] %vm129, %v102
    %141 = vst.msk [vmem:[#allocation2 + $0x82] sm:$0xff] %vm129, %v104
    %142 = vst.msk [vmem:[#allocation2 + $0x92] sm:$0xff] %vm129, %v106
    %143 = vst.msk [vmem:[#allocation2 + $0x9a] sm:$0xff] %vm129, %v108
    %144 = vst.msk [vmem:[#allocation2 + $0xaa] sm:$0xff] %vm129, %v110
    %145 = vst.msk [vmem:[#allocation2 + $0xb2] sm:$0xff] %vm129, %v112
    %v146 = vld [vmem:[#allocation2] sm:$0xff]
    %v147 = vld [vmem:[#allocation2 + $0x8] sm:$0xff]
    %v148 = vld [vmem:[#allocation2 + $0x10] sm:$0x7]
    %v149 = vld [vmem:[#allocation2 + $0x18] sm:$0xff]
    %v150 = vld [vmem:[#allocation2 + $0x20] sm:$0xff]
    %v151 = vld [vmem:[#allocation2 + $0x28] sm:$0x7]
    %v152 = vld [vmem:[#allocation2 + $0x30] sm:$0xff]
    %v153 = vld [vmem:[#allocation2 + $0x38] sm:$0xff]
    %v154 = vld [vmem:[#allocation2 + $0x40] sm:$0x7]
    %v155 = vld [vmem:[#allocation2 + $0x48] sm:$0xff]
    %v156 = vld [vmem:[#allocation2 + $0x50] sm:$0xff]
    %v157 = vld [vmem:[#allocation2 + $0x58] sm:$0x7]
    %v158 = vld [vmem:[#allocation2 + $0x60] sm:$0xff]
    %v159 = vld [vmem:[#allocation2 + $0x68] sm:$0xff]
    %v160 = vld [vmem:[#allocation2 + $0x70] sm:$0x7]
    %v161 = vld [vmem:[#allocation2 + $0x78] sm:$0xff]
    %v162 = vld [vmem:[#allocation2 + $0x80] sm:$0xff]
    %v163 = vld [vmem:[#allocation2 + $0x88] sm:$0x7]
    %v164 = vld [vmem:[#allocation2 + $0x90] sm:$0xff]
    %v165 = vld [vmem:[#allocation2 + $0x98] sm:$0xff]
    %v166 = vld [vmem:[#allocation2 + $0xa0] sm:$0x7]
    %v167 = vld [vmem:[#allocation2 + $0xa8] sm:$0xff]
    %v168 = vld [vmem:[#allocation2 + $0xb0] sm:$0xff]
    %v169 = vld [vmem:[#allocation2 + $0xb8] sm:$0x7]
    %v170 = vmul.f32 %v146, -0.2236068
    %v171 = vmul.f32 %v147, -0.2236068
    %v172 = vmul.f32 %v148, -0.2236068
    %v173 = vmul.f32 %v149, -0.2236068
    %v174 = vmul.f32 %v150, -0.2236068
    %v175 = vmul.f32 %v151, -0.2236068
    %v176 = vmul.f32 %v152, -0.2236068
    %v177 = vmul.f32 %v153, -0.2236068
    %v178 = vmul.f32 %v154, -0.2236068
    %v179 = vmul.f32 %v155, -0.2236068
    %v180 = vmul.f32 %v156, -0.2236068
    %v181 = vmul.f32 %v157, -0.2236068
    %v182 = vmul.f32 %v158, -0.2236068
    %v183 = vmul.f32 %v159, -0.2236068
    %v184 = vmul.f32 %v160, -0.2236068
    %v185 = vmul.f32 %v161, -0.2236068
    %v186 = vmul.f32 %v162, -0.2236068
    %v187 = vmul.f32 %v163, -0.2236068
    %v188 = vmul.f32 %v164, -0.2236068
    %v189 = vmul.f32 %v165, -0.2236068
    %v190 = vmul.f32 %v166, -0.2236068
    %v191 = vmul.f32 %v167, -0.2236068
    %v192 = vmul.f32 %v168, -0.2236068
    %v193 = vmul.f32 %v169, -0.2236068
    %v194 = vmul.f32 %v146, -0.6708204
    %v195 = vmul.f32 %v147, -0.6708204
    %v196 = vmul.f32 %v148, -0.6708204
    %v197 = vmul.f32 %v149, -0.6708204
    %v198 = vmul.f32 %v150, -0.6708204
    %v199 = vmul.f32 %v151, -0.6708204
    %v200 = vmul.f32 %v152, -0.6708204
    %v201 = vmul.f32 %v153, -0.6708204
    %v202 = vmul.f32 %v154, -0.6708204
    %v203 = vmul.f32 %v155, -0.6708204
    %v204 = vmul.f32 %v156, -0.6708204
    %v205 = vmul.f32 %v157, -0.6708204
    %v206 = vmul.f32 %v158, -0.6708204
    %v207 = vmul.f32 %v159, -0.6708204
    %v208 = vmul.f32 %v160, -0.6708204
    %v209 = vmul.f32 %v161, -0.6708204
    %v210 = vmul.f32 %v162, -0.6708204
    %v211 = vmul.f32 %v163, -0.6708204
    %v212 = vmul.f32 %v164, -0.6708204
    %v213 = vmul.f32 %v165, -0.6708204
    %v214 = vmul.f32 %v166, -0.6708204
    %v215 = vmul.f32 %v167, -0.6708204
    %v216 = vmul.f32 %v168, -0.6708204
    %v217 = vmul.f32 %v169, -0.6708204
    %242 = vrot.lane.b32.xlu0 %v194, 127
    %v243 = vpop.permute.xlu0 %242
    %244 = vrot.lane.b32.xlu0 %v195, 127
    %v245 = vpop.permute.xlu0 %244
    %246 = vrot.lane.b32.xlu0 %v196, 127
    %v247 = vpop.permute.xlu0 %246
    %248 = vrot.lane.b32.xlu0 %v197, 127
    %v249 = vpop.permute.xlu0 %248
    %250 = vrot.lane.b32.xlu0 %v198, 127
    %v251 = vpop.permute.xlu0 %250
    %252 = vrot.lane.b32.xlu0 %v199, 127
    %v253 = vpop.permute.xlu0 %252
    %254 = vrot.lane.b32.xlu0 %v200, 127
    %v255 = vpop.permute.xlu0 %254
    %256 = vrot.lane.b32.xlu0 %v201, 127
    %v257 = vpop.permute.xlu0 %256
    %258 = vrot.lane.b32.xlu0 %v202, 127
    %v259 = vpop.permute.xlu0 %258
    %260 = vrot.lane.b32.xlu0 %v203, 127
    %v261 = vpop.permute.xlu0 %260
    %262 = vrot.lane.b32.xlu0 %v204, 127
    %v263 = vpop.permute.xlu0 %262
    %264 = vrot.lane.b32.xlu0 %v205, 127
    %v265 = vpop.permute.xlu0 %264
    %266 = vrot.lane.b32.xlu0 %v206, 127
    %v267 = vpop.permute.xlu0 %266
    %268 = vrot.lane.b32.xlu0 %v207, 127
    %v269 = vpop.permute.xlu0 %268
    %270 = vrot.lane.b32.xlu0 %v208, 127
    %v271 = vpop.permute.xlu0 %270
    %272 = vrot.lane.b32.xlu0 %v209, 127
    %v273 = vpop.permute.xlu0 %272
    %274 = vrot.lane.b32.xlu0 %v210, 127
    %v275 = vpop.permute.xlu0 %274
    %276 = vrot.lane.b32.xlu0 %v211, 127
    %v277 = vpop.permute.xlu0 %276
    %278 = vrot.lane.b32.xlu0 %v212, 127
    %v279 = vpop.permute.xlu0 %278
    %280 = vrot.lane.b32.xlu0 %v213, 127
    %v281 = vpop.permute.xlu0 %280
    %282 = vrot.lane.b32.xlu0 %v214, 127
    %v283 = vpop.permute.xlu0 %282
    %284 = vrot.lane.b32.xlu0 %v215, 127
    %v285 = vpop.permute.xlu0 %284
    %286 = vrot.lane.b32.xlu0 %v216, 127
    %v287 = vpop.permute.xlu0 %286
    %288 = vrot.lane.b32.xlu0 %v217, 127
    %v289 = vpop.permute.xlu0 %288
    %v314 = vadd.f32 %v170, %v243
    %v315 = vadd.f32 %v171, %v245
    %v316 = vadd.f32 %v172, %v247
    %v317 = vadd.f32 %v173, %v249
    %v318 = vadd.f32 %v174, %v251
    %v319 = vadd.f32 %v175, %v253
    %v320 = vadd.f32 %v176, %v255
    %v321 = vadd.f32 %v177, %v257
    %v322 = vadd.f32 %v178, %v259
    %v323 = vadd.f32 %v179, %v261
    %v324 = vadd.f32 %v180, %v263
    %v325 = vadd.f32 %v181, %v265
    %v326 = vadd.f32 %v182, %v267
    %v327 = vadd.f32 %v183, %v269
    %v328 = vadd.f32 %v184, %v271
    %v329 = vadd.f32 %v185, %v273
    %v330 = vadd.f32 %v186, %v275
    %v331 = vadd.f32 %v187, %v277
    %v332 = vadd.f32 %v188, %v279
    %v333 = vadd.f32 %v189, %v281
    %v334 = vadd.f32 %v190, %v283
    %v335 = vadd.f32 %v191, %v285
    %v336 = vadd.f32 %v192, %v287
    %v337 = vadd.f32 %v193, %v289
    %362 = vrot.lane.b32.xlu0 %v170, 127
    %v363 = vpop.permute.xlu0 %362
    %364 = vrot.lane.b32.xlu0 %v171, 127
    %v365 = vpop.permute.xlu0 %364
    %366 = vrot.lane.b32.xlu0 %v172, 127
    %v367 = vpop.permute.xlu0 %366
    %368 = vrot.lane.b32.xlu0 %v173, 127
    %v369 = vpop.permute.xlu0 %368
    %370 = vrot.lane.b32.xlu0 %v174, 127
    %v371 = vpop.permute.xlu0 %370
    %372 = vrot.lane.b32.xlu0 %v175, 127
    %v373 = vpop.permute.xlu0 %372
    %374 = vrot.lane.b32.xlu0 %v176, 127
    %v375 = vpop.permute.xlu0 %374
    %376 = vrot.lane.b32.xlu0 %v177, 127
    %v377 = vpop.permute.xlu0 %376
    %378 = vrot.lane.b32.xlu0 %v178, 127
    %v379 = vpop.permute.xlu0 %378
    %380 = vrot.lane.b32.xlu0 %v179, 127
    %v381 = vpop.permute.xlu0 %380
    %382 = vrot.lane.b32.xlu0 %v180, 127
    %v383 = vpop.permute.xlu0 %382
    %384 = vrot.lane.b32.xlu0 %v181, 127
    %v385 = vpop.permute.xlu0 %384
    %386 = vrot.lane.b32.xlu0 %v182, 127
    %v387 = vpop.permute.xlu0 %386
    %388 = vrot.lane.b32.xlu0 %v183, 127
    %v389 = vpop.permute.xlu0 %388
    %390 = vrot.lane.b32.xlu0 %v184, 127
    %v391 = vpop.permute.xlu0 %390
    %392 = vrot.lane.b32.xlu0 %v185, 127
    %v393 = vpop.permute.xlu0 %392
    %394 = vrot.lane.b32.xlu0 %v186, 127
    %v395 = vpop.permute.xlu0 %394
    %396 = vrot.lane.b32.xlu0 %v187, 127
    %v397 = vpop.permute.xlu0 %396
    %398 = vrot.lane.b32.xlu0 %v188, 127
    %v399 = vpop.permute.xlu0 %398
    %400 = vrot.lane.b32.xlu0 %v189, 127
    %v401 = vpop.permute.xlu0 %400
    %402 = vrot.lane.b32.xlu0 %v190, 127
    %v403 = vpop.permute.xlu0 %402
    %404 = vrot.lane.b32.xlu0 %v191, 127
    %v405 = vpop.permute.xlu0 %404
    %406 = vrot.lane.b32.xlu0 %v192, 127
    %v407 = vpop.permute.xlu0 %406
    %408 = vrot.lane.b32.xlu0 %v193, 127
    %v409 = vpop.permute.xlu0 %408
    %v434 = vadd.f32 %v194, %v363
    %v435 = vadd.f32 %v195, %v365
    %v436 = vadd.f32 %v196, %v367
    %v437 = vadd.f32 %v197, %v369
    %v438 = vadd.f32 %v198, %v371
    %v439 = vadd.f32 %v199, %v373
    %v440 = vadd.f32 %v200, %v375
    %v441 = vadd.f32 %v201, %v377
    %v442 = vadd.f32 %v202, %v379
    %v443 = vadd.f32 %v203, %v381
    %v444 = vadd.f32 %v204, %v383
    %v445 = vadd.f32 %v205, %v385
    %v446 = vadd.f32 %v206, %v387
    %v447 = vadd.f32 %v207, %v389
    %v448 = vadd.f32 %v208, %v391
    %v449 = vadd.f32 %v209, %v393
    %v450 = vadd.f32 %v210, %v395
    %v451 = vadd.f32 %v211, %v397
    %v452 = vadd.f32 %v212, %v399
    %v453 = vadd.f32 %v213, %v401
    %v454 = vadd.f32 %v214, %v403
    %v455 = vadd.f32 %v215, %v405
    %v456 = vadd.f32 %v216, %v407
    %v457 = vadd.f32 %v217, %v409
    %482 = vrot.lane.b32.xlu0 %v434, 126
    %v483 = vpop.permute.xlu0 %482
    %484 = vrot.lane.b32.xlu0 %v435, 126
    %v485 = vpop.permute.xlu0 %484
    %486 = vrot.lane.b32.xlu0 %v436, 126
    %v487 = vpop.permute.xlu0 %486
    %488 = vrot.lane.b32.xlu0 %v437, 126
    %v489 = vpop.permute.xlu0 %488
    %490 = vrot.lane.b32.xlu0 %v438, 126
    %v491 = vpop.permute.xlu0 %490
    %492 = vrot.lane.b32.xlu0 %v439, 126
    %v493 = vpop.permute.xlu0 %492
    %494 = vrot.lane.b32.xlu0 %v440, 126
    %v495 = vpop.permute.xlu0 %494
    %496 = vrot.lane.b32.xlu0 %v441, 126
    %v497 = vpop.permute.xlu0 %496
    %498 = vrot.lane.b32.xlu0 %v442, 126
    %v499 = vpop.permute.xlu0 %498
    %500 = vrot.lane.b32.xlu0 %v443, 126
    %v501 = vpop.permute.xlu0 %500
    %502 = vrot.lane.b32.xlu0 %v444, 126
    %v503 = vpop.permute.xlu0 %502
    %504 = vrot.lane.b32.xlu0 %v445, 126
    %v505 = vpop.permute.xlu0 %504
    %506 = vrot.lane.b32.xlu0 %v446, 126
    %v507 = vpop.permute.xlu0 %506
    %508 = vrot.lane.b32.xlu0 %v447, 126
    %v509 = vpop.permute.xlu0 %508
    %510 = vrot.lane.b32.xlu0 %v448, 126
    %v511 = vpop.permute.xlu0 %510
    %512 = vrot.lane.b32.xlu0 %v449, 126
    %v513 = vpop.permute.xlu0 %512
    %514 = vrot.lane.b32.xlu0 %v450, 126
    %v515 = vpop.permute.xlu0 %514
    %516 = vrot.lane.b32.xlu0 %v451, 126
    %v517 = vpop.permute.xlu0 %516
    %518 = vrot.lane.b32.xlu0 %v452, 126
    %v519 = vpop.permute.xlu0 %518
    %520 = vrot.lane.b32.xlu0 %v453, 126
    %v521 = vpop.permute.xlu0 %520
    %522 = vrot.lane.b32.xlu0 %v454, 126
    %v523 = vpop.permute.xlu0 %522
    %524 = vrot.lane.b32.xlu0 %v455, 126
    %v525 = vpop.permute.xlu0 %524
    %526 = vrot.lane.b32.xlu0 %v456, 126
    %v527 = vpop.permute.xlu0 %526
    %528 = vrot.lane.b32.xlu0 %v457, 126
    %v529 = vpop.permute.xlu0 %528
    %v554 = vadd.f32 %v314, %v483
    %v555 = vadd.f32 %v315, %v485
    %v556 = vadd.f32 %v316, %v487
    %v557 = vadd.f32 %v317, %v489
    %v558 = vadd.f32 %v318, %v491
    %v559 = vadd.f32 %v319, %v493
    %v560 = vadd.f32 %v320, %v495
    %v561 = vadd.f32 %v321, %v497
    %v562 = vadd.f32 %v322, %v499
    %v563 = vadd.f32 %v323, %v501
    %v564 = vadd.f32 %v324, %v503
    %v565 = vadd.f32 %v325, %v505
    %v566 = vadd.f32 %v326, %v507
    %v567 = vadd.f32 %v327, %v509
    %v568 = vadd.f32 %v328, %v511
    %v569 = vadd.f32 %v329, %v513
    %v570 = vadd.f32 %v330, %v515
    %v571 = vadd.f32 %v331, %v517
    %v572 = vadd.f32 %v332, %v519
    %v573 = vadd.f32 %v333, %v521
    %v574 = vadd.f32 %v334, %v523
    %v575 = vadd.f32 %v335, %v525
    %v576 = vadd.f32 %v336, %v527
    %v577 = vadd.f32 %v337, %v529
    %v578 = vmul.f32 %v554, -0.069877125
    %v579 = vmul.f32 %v555, -0.069877125
    %v580 = vmul.f32 %v557, -0.069877125
    %v581 = vmul.f32 %v558, -0.069877125
    %v582 = vmul.f32 %v560, -0.069877125
    %v583 = vmul.f32 %v561, -0.069877125
    %v584 = vmul.f32 %v563, -0.069877125
    %v585 = vmul.f32 %v564, -0.069877125
    %v586 = vmul.f32 %v566, -0.069877125
    %v587 = vmul.f32 %v567, -0.069877125
    %v588 = vmul.f32 %v569, -0.069877125
    %v589 = vmul.f32 %v570, -0.069877125
    %v590 = vmul.f32 %v572, -0.069877125
    %v591 = vmul.f32 %v573, -0.069877125
    %v592 = vmul.f32 %v575, -0.069877125
    %v593 = vmul.f32 %v576, -0.069877125
    %v594 = vmul.f32 %v554, -0.20963137
    %v595 = vmul.f32 %v555, -0.20963137
    %v596 = vmul.f32 %v556, -0.20963137
    %v597 = vmul.f32 %v557, -0.20963137
    %v598 = vmul.f32 %v558, -0.20963137
    %v599 = vmul.f32 %v559, -0.20963137
    %v600 = vmul.f32 %v560, -0.20963137
    %v601 = vmul.f32 %v561, -0.20963137
    %v602 = vmul.f32 %v562, -0.20963137
    %v603 = vmul.f32 %v563, -0.20963137
    %v604 = vmul.f32 %v564, -0.20963137
    %v605 = vmul.f32 %v565, -0.20963137
    %v606 = vmul.f32 %v566, -0.20963137
    %v607 = vmul.f32 %v567, -0.20963137
    %v608 = vmul.f32 %v568, -0.20963137
    %v609 = vmul.f32 %v569, -0.20963137
    %v610 = vmul.f32 %v570, -0.20963137
    %v611 = vmul.f32 %v571, -0.20963137
    %v612 = vmul.f32 %v572, -0.20963137
    %v613 = vmul.f32 %v573, -0.20963137
    %v614 = vmul.f32 %v574, -0.20963137
    %v615 = vmul.f32 %v575, -0.20963137
    %v616 = vmul.f32 %v576, -0.20963137
    %v617 = vmul.f32 %v577, -0.20963137
    %v618 = vmul.f32 %v556, -0.069877125
    %v619 = vmul.f32 %v559, -0.069877125
    %v620 = vmul.f32 %v562, -0.069877125
    %v621 = vmul.f32 %v565, -0.069877125
    %v622 = vmul.f32 %v568, -0.069877125
    %v623 = vmul.f32 %v571, -0.069877125
    %v624 = vmul.f32 %v574, -0.069877125
    %v625 = vmul.f32 %v577, -0.069877125
    %vm650 = vcmask 1046528
    %v651 = vrot.slane %v594, 1
    %v652 = vrot.slane %v595, 1
    %v653 = vsel %vm650, %v651, %v652
    %v654 = vrot.slane %v596, 1
    %v655 = vsel %vm650, %v652, %v654
    %v656 = vrot.slane %v597, 1
    %v657 = vrot.slane %v598, 1
    %v658 = vsel %vm650, %v656, %v657
    %v659 = vrot.slane %v599, 1
    %v660 = vsel %vm650, %v657, %v659
    %v661 = vrot.slane %v600, 1
    %v662 = vrot.slane %v601, 1
    %v663 = vsel %vm650, %v661, %v662
    %v664 = vrot.slane %v602, 1
    %v665 = vsel %vm650, %v662, %v664
    %v666 = vrot.slane %v603, 1
    %v667 = vrot.slane %v604, 1
    %v668 = vsel %vm650, %v666, %v667
    %v669 = vrot.slane %v605, 1
    %v670 = vsel %vm650, %v667, %v669
    %v671 = vrot.slane %v606, 1
    %v672 = vrot.slane %v607, 1
    %v673 = vsel %vm650, %v671, %v672
    %v674 = vrot.slane %v608, 1
    %v675 = vsel %vm650, %v672, %v674
    %v676 = vrot.slane %v609, 1
    %v677 = vrot.slane %v610, 1
    %v678 = vsel %vm650, %v676, %v677
    %v679 = vrot.slane %v611, 1
    %v680 = vsel %vm650, %v677, %v679
    %v681 = vrot.slane %v612, 1
    %v682 = vrot.slane %v613, 1
    %v683 = vsel %vm650, %v681, %v682
    %v684 = vrot.slane %v614, 1
    %v685 = vsel %vm650, %v682, %v684
    %v686 = vrot.slane %v615, 1
    %v687 = vrot.slane %v616, 1
    %v688 = vsel %vm650, %v686, %v687
    %v689 = vrot.slane %v617, 1
    %v690 = vsel %vm650, %v687, %v689
    %v707 = vadd.f32 %v578, %v653
    %v708 = vadd.f32 %v579, %v655
    %v709 = vadd.f32 %v580, %v658
    %v710 = vadd.f32 %v581, %v660
    %v711 = vadd.f32 %v582, %v663
    %v712 = vadd.f32 %v583, %v665
    %v713 = vadd.f32 %v584, %v668
    %v714 = vadd.f32 %v585, %v670
    %v715 = vadd.f32 %v586, %v673
    %v716 = vadd.f32 %v587, %v675
    %v717 = vadd.f32 %v588, %v678
    %v718 = vadd.f32 %v589, %v680
    %v719 = vadd.f32 %v590, %v683
    %v720 = vadd.f32 %v591, %v685
    %v721 = vadd.f32 %v592, %v688
    %v722 = vadd.f32 %v593, %v690
    %v747 = vrot.slane %v578, 1
    %v748 = vrot.slane %v579, 1
    %v749 = vsel %vm650, %v747, %v748
    %v750 = vrot.slane %v618, 1
    %v751 = vsel %vm650, %v748, %v750
    %v752 = vrot.slane %v580, 1
    %v753 = vrot.slane %v581, 1
    %v754 = vsel %vm650, %v752, %v753
    %v755 = vrot.slane %v619, 1
    %v756 = vsel %vm650, %v753, %v755
    %v757 = vrot.slane %v582, 1
    %v758 = vrot.slane %v583, 1
    %v759 = vsel %vm650, %v757, %v758
    %v760 = vrot.slane %v620, 1
    %v761 = vsel %vm650, %v758, %v760
    %v762 = vrot.slane %v584, 1
    %v763 = vrot.slane %v585, 1
    %v764 = vsel %vm650, %v762, %v763
    %v765 = vrot.slane %v621, 1
    %v766 = vsel %vm650, %v763, %v765
    %v767 = vrot.slane %v586, 1
    %v768 = vrot.slane %v587, 1
    %v769 = vsel %vm650, %v767, %v768
    %v770 = vrot.slane %v622, 1
    %v771 = vsel %vm650, %v768, %v770
    %v772 = vrot.slane %v588, 1
    %v773 = vrot.slane %v589, 1
    %v774 = vsel %vm650, %v772, %v773
    %v775 = vrot.slane %v623, 1
    %v776 = vsel %vm650, %v773, %v775
    %v777 = vrot.slane %v590, 1
    %v778 = vrot.slane %v591, 1
    %v779 = vsel %vm650, %v777, %v778
    %v780 = vrot.slane %v624, 1
    %v781 = vsel %vm650, %v778, %v780
    %v782 = vrot.slane %v592, 1
    %v783 = vrot.slane %v593, 1
    %v784 = vsel %vm650, %v782, %v783
    %v785 = vrot.slane %v625, 1
    %v786 = vsel %vm650, %v783, %v785
    %v811 = vadd.f32 %v594, %v749
    %v812 = vadd.f32 %v595, %v751
    %v813 = vadd.f32 %v596, %v750
    %v814 = vadd.f32 %v597, %v754
    %v815 = vadd.f32 %v598, %v756
    %v816 = vadd.f32 %v599, %v755
    %v817 = vadd.f32 %v600, %v759
    %v818 = vadd.f32 %v601, %v761
    %v819 = vadd.f32 %v602, %v760
    %v820 = vadd.f32 %v603, %v764
    %v821 = vadd.f32 %v604, %v766
    %v822 = vadd.f32 %v605, %v765
    %v823 = vadd.f32 %v606, %v769
    %v824 = vadd.f32 %v607, %v771
    %v825 = vadd.f32 %v608, %v770
    %v826 = vadd.f32 %v609, %v774
    %v827 = vadd.f32 %v610, %v776
    %v828 = vadd.f32 %v611, %v775
    %v829 = vadd.f32 %v612, %v779
    %v830 = vadd.f32 %v613, %v781
    %v831 = vadd.f32 %v614, %v780
    %v832 = vadd.f32 %v615, %v784
    %v833 = vadd.f32 %v616, %v786
    %v834 = vadd.f32 %v617, %v785
    %vm859 = vcmask 1045504
    %v860 = vrot.slane %v811, 2
    %v861 = vrot.slane %v812, 2
    %v862 = vsel %vm859, %v860, %v861
    %v863 = vrot.slane %v813, 2
    %v864 = vsel %vm859, %v861, %v863
    %v865 = vrot.slane %v814, 2
    %v866 = vrot.slane %v815, 2
    %v867 = vsel %vm859, %v865, %v866
    %v868 = vrot.slane %v816, 2
    %v869 = vsel %vm859, %v866, %v868
    %v870 = vrot.slane %v817, 2
    %v871 = vrot.slane %v818, 2
    %v872 = vsel %vm859, %v870, %v871
    %v873 = vrot.slane %v819, 2
    %v874 = vsel %vm859, %v871, %v873
    %v875 = vrot.slane %v820, 2
    %v876 = vrot.slane %v821, 2
    %v877 = vsel %vm859, %v875, %v876
    %v878 = vrot.slane %v822, 2
    %v879 = vsel %vm859, %v876, %v878
    %v880 = vrot.slane %v823, 2
    %v881 = vrot.slane %v824, 2
    %v882 = vsel %vm859, %v880, %v881
    %v883 = vrot.slane %v825, 2
    %v884 = vsel %vm859, %v881, %v883
    %v885 = vrot.slane %v826, 2
    %v886 = vrot.slane %v827, 2
    %v887 = vsel %vm859, %v885, %v886
    %v888 = vrot.slane %v828, 2
    %v889 = vsel %vm859, %v886, %v888
    %v890 = vrot.slane %v829, 2
    %v891 = vrot.slane %v830, 2
    %v892 = vsel %vm859, %v890, %v891
    %v893 = vrot.slane %v831, 2
    %v894 = vsel %vm859, %v891, %v893
    %v895 = vrot.slane %v832, 2
    %v896 = vrot.slane %v833, 2
    %v897 = vsel %vm859, %v895, %v896
    %v898 = vrot.slane %v834, 2
    %v899 = vsel %vm859, %v896, %v898
    %v916 = vadd.f32 %v707, %v862
    %v917 = vadd.f32 %v708, %v864
    %v918 = vadd.f32 %v709, %v867
    %v919 = vadd.f32 %v710, %v869
    %v920 = vadd.f32 %v711, %v872
    %v921 = vadd.f32 %v712, %v874
    %v922 = vadd.f32 %v713, %v877
    %v923 = vadd.f32 %v714, %v879
    %v924 = vadd.f32 %v715, %v882
    %v925 = vadd.f32 %v716, %v884
    %v926 = vadd.f32 %v717, %v887
    %v927 = vadd.f32 %v718, %v889
    %v928 = vadd.f32 %v719, %v892
    %v929 = vadd.f32 %v720, %v894
    %v930 = vadd.f32 %v721, %v897
    %v931 = vadd.f32 %v722, %v899
    %vm932 = vcmask 130048
    %933 = vst.msk [vmem:[#allocation6] sm:$0xff] %vm932, %v916
    %934 = vst.msk [vmem:[#allocation6 + $0x8] sm:$0xff] %vm932, %v917
    %935 = vst.msk [vmem:[#allocation6 + $0x10] sm:$0xff] %vm932, %v918
    %936 = vst.msk [vmem:[#allocation6 + $0x18] sm:$0xff] %vm932, %v919
    %937 = vst.msk [vmem:[#allocation6 + $0x20] sm:$0xff] %vm932, %v920
    %938 = vst.msk [vmem:[#allocation6 + $0x28] sm:$0xff] %vm932, %v921
    %939 = vst.msk [vmem:[#allocation6 + $0x30] sm:$0xff] %vm932, %v922
    %940 = vst.msk [vmem:[#allocation6 + $0x38] sm:$0xff] %vm932, %v923
    %941 = vst.msk [vmem:[#allocation6 + $0x40] sm:$0xff] %vm932, %v924
    %942 = vst.msk [vmem:[#allocation6 + $0x48] sm:$0xff] %vm932, %v925
    %943 = vst.msk [vmem:[#allocation6 + $0x50] sm:$0xff] %vm932, %v926
    %944 = vst.msk [vmem:[#allocation6 + $0x58] sm:$0xff] %vm932, %v927
    %945 = vst.msk [vmem:[#allocation6 + $0x60] sm:$0xff] %vm932, %v928
    %946 = vst.msk [vmem:[#allocation6 + $0x68] sm:$0xff] %vm932, %v929
    %947 = vst.msk [vmem:[#allocation6 + $0x70] sm:$0xff] %vm932, %v930
    %948 = vst.msk [vmem:[#allocation6 + $0x78] sm:$0xff] %vm932, %v931
    // Predicated region
    $region10: #{tpu_custom_call.1} parent=1 // pred_check
      _
    $region11: #{tpu_custom_call.1} parent=1 // pred_check_branch
      %950 = sbr.rel (0) target = $region13
    $region12: #{tpu_custom_call.1} parent=1 // pred_region
      %s952 = ssub.s32 2048, 2048
      %953 = vsyncadd [#allocation5], %s952
      %s954 = sshll.u32 [#allocation6], 4
      %s955 = int_to_ptr.vmem [resolvable:$true] %s954
      %960 = dma.vmem_to_hbm [thread:$0]  %s955, 2048, %s1, [#allocation5], 128, 128, 8
    $region13: #{tpu_custom_call.1} parent=1 // pred_fallthru
      _
    // Predicated region
    $region14: #{tpu_custom_call.1} parent=1 // pred_check
      _
    $region15: #{tpu_custom_call.1} parent=1 // pred_check_branch
      %962 = sbr.rel (0) target = $region17
    $region16: #{tpu_custom_call.1} parent=1 // pred_region
      %963 = dma.done [#allocation5], 2048
    $region17: #{tpu_custom_call.1} parent=1 // pred_fallthru
      _
    %964 = vsyncpa [#allocation4], 1
    %965 = vsyncpa [#allocation5], 1

</llo_original>
